<compile_context>
chip_gen: v5e
topology: v5e:2x2
jax: 0.10.0
libtpu: 0.0.40
codegen_flags: <defaults>
</compile_context>

<pallas_src>
import jax
import jax.numpy as jnp
from jax.experimental import pallas as pl
from jax.experimental.pallas import tpu as pltpu

HIDDEN = 512
LANES = 128      # TPU lane width; pad state_dim up to this
TB_MAX = 128     # batch tile: saturates MXU rows on v5e, fine on v6e/v7x


def _round_up(x, m):
    return (x + m - 1) // m * m


def _rnd_mlp_kernel(x_ref, w1_ref, b1_ref, w2_ref, b2_ref, w3_ref, b3_ref,
                    o_ref):
    """One batch tile of the 3-layer MLP.

    Weights/biases have constant index_maps, so the pipeline keeps them
    resident in VMEM across batch tiles (no redundant HBM refetch).
    """
    wdt = w1_ref.dtype
    x = x_ref[...].astype(wdt)                                    # (TB, Dp)

    # Layer 1: Linear(Dp -> 512) + ReLU (MXU matmul, f32 accumulate)
    h1 = jnp.dot(x, w1_ref[...], preferred_element_type=jnp.float32)
    h1 = jnp.maximum(h1 + b1_ref[...], 0.0)                       # f32

    # Layer 2: Linear(512 -> 512) + ReLU
    h2 = jnp.dot(h1.astype(wdt), w2_ref[...],
                 preferred_element_type=jnp.float32)
    h2 = jnp.maximum(h2 + b2_ref[...], 0.0)

    # Layer 3: Linear(512 -> Dp)
    out = jnp.dot(h2.astype(wdt), w3_ref[...],
                  preferred_element_type=jnp.float32)
    o_ref[...] = (out + b3_ref[...]).astype(o_ref.dtype)


def rnd_model_forward(states, params, *, use_bf16=False, tile_b=TB_MAX):
    """Pallas implementation of RND_Model.forward.

    states: (B, state_dim) float32
    params: dict with w1 (D,512), b1 (512,), w2 (512,512), b2 (512,),
            w3 (512,D), b3 (D,)   — weights already stored (in, out).
    use_bf16: cast matmul inputs to bf16 (f32 accumulate) for MXU throughput.
    """
    B, D = states.shape
    f32 = jnp.float32
    wdt = jnp.bfloat16 if use_bf16 else f32

    # Pad state_dim to a lane-dense multiple of 128 and batch to the tile size.
    Dp = _round_up(max(D, LANES), LANES)
    TB = min(tile_b, _round_up(B, 8))       # block 2nd-minor dim must be %8
    Bp = _round_up(B, TB)

    x = jnp.zeros((Bp, Dp), f32).at[:B, :D].set(states.astype(f32))
    w1 = jnp.zeros((Dp, HIDDEN), f32).at[:D, :].set(params["w1"]).astype(wdt)
    w2 = params["w2"].astype(wdt)
    w3 = jnp.zeros((HIDDEN, Dp), f32).at[:, :D].set(params["w3"]).astype(wdt)
    b1 = params["b1"].reshape(1, HIDDEN).astype(f32)
    b2 = params["b2"].reshape(1, HIDDEN).astype(f32)
    b3 = jnp.zeros((1, Dp), f32).at[:, :D].set(params["b3"].reshape(1, D))

    grid = (Bp // TB,)

    tiled = lambda shape: pl.BlockSpec(shape, lambda i: (i, 0))    # streams
    pinned = lambda shape: pl.BlockSpec(shape, lambda i: (0, 0))   # resident

    out = pl.pallas_call(
        _rnd_mlp_kernel,
        out_shape=jax.ShapeDtypeStruct((Bp, Dp), states.dtype),
        grid=grid,
        in_specs=[
            tiled((TB, Dp)),            # x
            pinned((Dp, HIDDEN)),       # w1
            pinned((1, HIDDEN)),        # b1
            pinned((HIDDEN, HIDDEN)),   # w2
            pinned((1, HIDDEN)),        # b2
            pinned((HIDDEN, Dp)),       # w3
            pinned((1, Dp)),            # b3
        ],
        out_specs=tiled((TB, Dp)),
        # Batch tiles are independent -> let Mosaic shard across TCs (v7x).
        # No vmem_limit override: working set is ~2 MiB, defaults suffice.
        compiler_params=pltpu.CompilerParams(
            dimension_semantics=("parallel",)),
    )(x, w1, b1, w2, b2, w3, b3)

    return out[:B, :D]


def init_params(key, state_dim):
    """Deterministic init mirroring nn.Linear default (uniform +/- 1/sqrt(fan_in))."""
    ks = jax.random.split(key, 6)

    def lin(kw, kb, fan_in, fan_out):
        bound = 1.0 / jnp.sqrt(float(fan_in))
        w = jax.random.uniform(kw, (fan_in, fan_out), jnp.float32, -bound, bound)
        b = jax.random.uniform(kb, (fan_out,), jnp.float32, -bound, bound)
        return w, b

    w1, b1 = lin(ks[0], ks[1], state_dim, HIDDEN)
    w2, b2 = lin(ks[2], ks[3], HIDDEN, HIDDEN)
    w3, b3 = lin(ks[4], ks[5], HIDDEN, state_dim)
    return dict(w1=w1, b1=b1, w2=w2, b2=b2, w3=w3, b3=b3)


def _reference(states, p):
    h1 = jnp.maximum(states @ p["w1"] + p["b1"], 0.0)
    h2 = jnp.maximum(h1 @ p["w2"] + p["b2"], 0.0)
    return h2 @ p["w3"] + p["b3"]


if __name__ == "__main__":
    key = jax.random.PRNGKey(0)
    k_x, k_p, k_x2 = jax.random.split(key, 3)

    # Small shapes consistent with the module (single-tile path).
    batch, state_dim = 8, 16
    states = jax.random.normal(k_x, (batch, state_dim), jnp.float32)
    params = init_params(k_p, state_dim)

    out = jax.block_until_ready(rnd_model_forward(states, params))
    ref = _reference(states, params)
    assert out.shape == (batch, state_dim)
    assert jnp.allclose(out, ref, atol=1e-4, rtol=1e-4)

    # Multi-tile path: exercises batch pipelining / resident weights.
    big_b = 256
    states_big = jax.random.normal(k_x2, (big_b, state_dim), jnp.float32)
    out_big = jax.block_until_ready(rnd_model_forward(states_big, params))
    ref_big = _reference(states_big, params)
    assert out_big.shape == (big_b, state_dim)
    assert jnp.allclose(out_big, ref_big, atol=1e-4, rtol=1e-4)

    # Optional bf16 MXU path (f32 accumulate) — looser tolerance by design.
    out_bf16 = jax.block_until_ready(
        rnd_model_forward(states_big, params, use_bf16=True))
    assert jnp.allclose(out_bf16, ref_big, atol=1e-1, rtol=1e-1)

    print("KERNEL_OK")
</pallas_src>

<mosaic_0001>
module attributes {stable_mosaic.version = 11 : i64} {
  func.func @_rnd_mlp_kernel(%arg0: i32, %arg1: memref<8x128xf32, #tpu.memory_space<vmem>>, %arg2: memref<128x512xf32, #tpu.memory_space<vmem>>, %arg3: memref<1x512xf32, #tpu.memory_space<vmem>>, %arg4: memref<512x512xf32, #tpu.memory_space<vmem>>, %arg5: memref<1x512xf32, #tpu.memory_space<vmem>>, %arg6: memref<512x128xf32, #tpu.memory_space<vmem>>, %arg7: memref<1x128xf32, #tpu.memory_space<vmem>>, %arg8: memref<8x128xf32, #tpu.memory_space<vmem>>) attributes {dimension_semantics = [#tpu.dimension_semantics<parallel>], iteration_bounds = array<i64: 1>, scalar_prefetch = 0 : i64, scratch_operands = 0 : i64, tpu.core_type = #tpu.core_type<tc>, window_params = [{transform_indices = @transform_0, window_bounds = array<i64: 8, 128>}, {pipeline_mode = #tpu.pipeline_mode<synchronous>, transform_indices = @transform_1, window_bounds = array<i64: 128, 512>}, {pipeline_mode = #tpu.pipeline_mode<synchronous>, transform_indices = @transform_2, window_bounds = array<i64: 1, 512>}, {pipeline_mode = #tpu.pipeline_mode<synchronous>, transform_indices = @transform_3, window_bounds = array<i64: 512, 512>}, {pipeline_mode = #tpu.pipeline_mode<synchronous>, transform_indices = @transform_4, window_bounds = array<i64: 1, 512>}, {pipeline_mode = #tpu.pipeline_mode<synchronous>, transform_indices = @transform_5, window_bounds = array<i64: 512, 128>}, {pipeline_mode = #tpu.pipeline_mode<synchronous>, transform_indices = @transform_6, window_bounds = array<i64: 1, 128>}, {transform_indices = @transform_7, window_bounds = array<i64: 8, 128>}]} {
    %c0 = arith.constant 0 : index
    %c0_0 = arith.constant 0 : index
    %0 = vector.load %arg1[%c0, %c0_0] : memref<8x128xf32, #tpu.memory_space<vmem>>, vector<8x128xf32>
    %c0_1 = arith.constant 0 : index
    %c0_2 = arith.constant 0 : index
    %1 = vector.load %arg2[%c0_1, %c0_2] : memref<128x512xf32, #tpu.memory_space<vmem>>, vector<128x512xf32>
    %cst = arith.constant dense<0.000000e+00> : vector<8x512xf32>
    %2 = tpu.matmul %0, %1, %cst {dimension_numbers = #tpu.dot_dimension_numbers<[1], [0], [0], [1], [0, 0, 1, 1], [], []>} : vector<8x128xf32>, vector<128x512xf32>, vector<8x512xf32> -> vector<8x512xf32>
    %c0_3 = arith.constant 0 : index
    %c0_4 = arith.constant 0 : index
    %3 = vector.load %arg3[%c0_3, %c0_4] : memref<1x512xf32, #tpu.memory_space<vmem>>, vector<1x512xf32>
    %4 = vector.broadcast %3 : vector<1x512xf32> to vector<8x512xf32>
    %5 = arith.addf %2, %4 : vector<8x512xf32>
    %cst_5 = arith.constant 0.000000e+00 : f32
    %6 = vector.broadcast %cst_5 : f32 to vector<8x512xf32>
    %7 = arith.maximumf %5, %6 : vector<8x512xf32>
    %c0_6 = arith.constant 0 : index
    %c0_7 = arith.constant 0 : index
    %8 = vector.load %arg4[%c0_6, %c0_7] : memref<512x512xf32, #tpu.memory_space<vmem>>, vector<512x512xf32>
    %cst_8 = arith.constant dense<0.000000e+00> : vector<8x512xf32>
    %9 = tpu.matmul %7, %8, %cst_8 {dimension_numbers = #tpu.dot_dimension_numbers<[1], [0], [0], [1], [0, 0, 1, 1], [], []>} : vector<8x512xf32>, vector<512x512xf32>, vector<8x512xf32> -> vector<8x512xf32>
    %c0_9 = arith.constant 0 : index
    %c0_10 = arith.constant 0 : index
    %10 = vector.load %arg5[%c0_9, %c0_10] : memref<1x512xf32, #tpu.memory_space<vmem>>, vector<1x512xf32>
    %11 = vector.broadcast %10 : vector<1x512xf32> to vector<8x512xf32>
    %12 = arith.addf %9, %11 : vector<8x512xf32>
    %cst_11 = arith.constant 0.000000e+00 : f32
    %13 = vector.broadcast %cst_11 : f32 to vector<8x512xf32>
    %14 = arith.maximumf %12, %13 : vector<8x512xf32>
    %c0_12 = arith.constant 0 : index
    %c0_13 = arith.constant 0 : index
    %15 = vector.load %arg6[%c0_12, %c0_13] : memref<512x128xf32, #tpu.memory_space<vmem>>, vector<512x128xf32>
    %cst_14 = arith.constant dense<0.000000e+00> : vector<8x128xf32>
    %16 = tpu.matmul %14, %15, %cst_14 {dimension_numbers = #tpu.dot_dimension_numbers<[1], [0], [0], [1], [0, 0, 1, 1], [], []>} : vector<8x512xf32>, vector<512x128xf32>, vector<8x128xf32> -> vector<8x128xf32>
    %c0_15 = arith.constant 0 : index
    %c0_16 = arith.constant 0 : index
    %17 = vector.load %arg7[%c0_15, %c0_16] : memref<1x128xf32, #tpu.memory_space<vmem>>, vector<1x128xf32>
    %18 = vector.broadcast %17 : vector<1x128xf32> to vector<8x128xf32>
    %19 = arith.addf %16, %18 : vector<8x128xf32>
    %c0_17 = arith.constant 0 : index
    %c0_18 = arith.constant 0 : index
    %20 = vector.load %arg8[%c0_17, %c0_18] : memref<8x128xf32, #tpu.memory_space<vmem>>, vector<8x128xf32>
    tpu.vector_store %arg8[%c0_17, %c0_18], %19 {strides = array<i32>} : memref<8x128xf32, #tpu.memory_space<vmem>>, vector<8x128xf32>,
    return
  }
  func.func @transform_0(%arg0: i32) -> (i32, i32) {
    %c0_i32 = arith.constant 0 : i32
    %c0_i32_0 = arith.constant 0 : i32
    return %arg0, %c0_i32 : i32, i32
  }
  func.func @transform_1(%arg0: i32) -> (i32, i32) {
    %c0_i32 = arith.constant 0 : i32
    %c0_i32_0 = arith.constant 0 : i32
    %c0_i32_1 = arith.constant 0 : i32
    return %c0_i32, %c0_i32_0 : i32, i32
  }
  func.func @transform_2(%arg0: i32) -> (i32, i32) {
    %c0_i32 = arith.constant 0 : i32
    %c0_i32_0 = arith.constant 0 : i32
    %c0_i32_1 = arith.constant 0 : i32
    return %c0_i32, %c0_i32_0 : i32, i32
  }
  func.func @transform_3(%arg0: i32) -> (i32, i32) {
    %c0_i32 = arith.constant 0 : i32
    %c0_i32_0 = arith.constant 0 : i32
    %c0_i32_1 = arith.constant 0 : i32
    return %c0_i32, %c0_i32_0 : i32, i32
  }
  func.func @transform_4(%arg0: i32) -> (i32, i32) {
    %c0_i32 = arith.constant 0 : i32
    %c0_i32_0 = arith.constant 0 : i32
    %c0_i32_1 = arith.constant 0 : i32
    return %c0_i32, %c0_i32_0 : i32, i32
  }
  func.func @transform_5(%arg0: i32) -> (i32, i32) {
    %c0_i32 = arith.constant 0 : i32
    %c0_i32_0 = arith.constant 0 : i32
    %c0_i32_1 = arith.constant 0 : i32
    return %c0_i32, %c0_i32_0 : i32, i32
  }
  func.func @transform_6(%arg0: i32) -> (i32, i32) {
    %c0_i32 = arith.constant 0 : i32
    %c0_i32_0 = arith.constant 0 : i32
    %c0_i32_1 = arith.constant 0 : i32
    return %c0_i32, %c0_i32_0 : i32, i32
  }
  func.func @transform_7(%arg0: i32) -> (i32, i32) {
    %c0_i32 = arith.constant 0 : i32
    %c0_i32_0 = arith.constant 0 : i32
    return %arg0, %c0_i32 : i32, i32
  }
}

</mosaic_0001>

<llo_original>
// kernel: tpu_custom_call.1
$region0: #{tpu_custom_call.1}
  #allocation0 [shape = 'u32[]', space=smem, size = 0x4, offset = 0x4, fixed_abs, tag = 'smem constant byte address 0x4 - core index']
  #allocation1 [shape = 'u32[72,128]{1,0:T(1,128)}', space=vmem, size = 0x9000, scoped, tag = 'internal scratch']
  %s0 = inlined_call_operand.hbm [shape: f32[8,128], index: 0, kind: input, shape index: {}]
  %s1 = inlined_call_operand.hbm [shape: f32[128,512], index: 1, kind: input, shape index: {}]
  %s2 = inlined_call_operand.hbm [shape: f32[1,512], index: 2, kind: input, shape index: {}]
  %s3 = inlined_call_operand.hbm [shape: f32[512,512], index: 3, kind: input, shape index: {}]
  %s4 = inlined_call_operand.hbm [shape: f32[1,512], index: 4, kind: input, shape index: {}]
  %s5 = inlined_call_operand.hbm [shape: f32[512,128], index: 5, kind: input, shape index: {}]
  %s6 = inlined_call_operand.vmem [shape: f32[1,128], index: 6, kind: input, shape index: {}]
  %s7 = inlined_call_operand.hbm [shape: f32[8,128], index: 7, kind: output, shape index: {}]
  %s8 = sld [smem:[#allocation0]]
  $region62: #{tpu_custom_call.1} parent=0
    _
  %s10 = ssub.s32 1, %s8
  %s11 = scalar_select 0, %s10, %s8
  $region1: #{tpu_custom_call.1} parent=0
    #allocation2 [shape = 'u8[4096]{0}', space=vmem, size = 0x1000, scoped, tag = 'input window, operand 0, single buffered']
    #allocation3 [shape = 's32[1]{0}', space=sflag, size = 0x4, scoped, tag = 'scoped memory for tpu_custom_call.1']
    #allocation4 [shape = 's32[1]{0}', space=sflag, size = 0x4, scoped, tag = 'scoped memory for tpu_custom_call.1']
    #allocation5 [shape = 'u8[262144]{0}', space=vmem, size = 0x40000, scoped, tag = 'input window, operand 1, single buffered']
    #allocation6 [shape = 's32[1]{0}', space=sflag, size = 0x4, scoped, tag = 'scoped memory for tpu_custom_call.1']
    #allocation7 [shape = 'u8[2048]{0}', space=vmem, size = 0x800, scoped, tag = 'input window, operand 2, single buffered']
    #allocation8 [shape = 'u8[1048576]{0}', space=vmem, size = 0x100000, scoped, tag = 'input window, operand 3, single buffered']
    #allocation9 [shape = 's32[1]{0}', space=sflag, size = 0x4, scoped, tag = 'scoped memory for tpu_custom_call.1']
    #allocation10 [shape = 'u8[2048]{0}', space=vmem, size = 0x800, scoped, tag = 'input window, operand 4, single buffered']
    #allocation11 [shape = 'u8[262144]{0}', space=vmem, size = 0x40000, scoped, tag = 'input window, operand 5, single buffered']
    #allocation12 [shape = 's32[1]{0}', space=sflag, size = 0x4, scoped, tag = 'scoped memory for tpu_custom_call.1']
    #allocation13 [shape = 'u8[4096]{0}', space=vmem, size = 0x1000, scoped, tag = 'output window, operand 0, single buffered']
    %12 = vsyncpa [#allocation3], 0
    %13 = vsyncpa [#allocation6], 0
    %14 = vsyncpa [#allocation9], 0
    %15 = vsyncpa [#allocation12], 0
    %16 = vsyncpa [#allocation4], 0
    // Predicated region
    $region2: #{tpu_custom_call.1} parent=1 // pred_check
      _
    $region3: #{tpu_custom_call.1} parent=1 // pred_check_branch
      %18 = sbr.rel (0) target = $region5
    $region4: #{tpu_custom_call.1} parent=1 // pred_region
      %20 = vsyncadd [#allocation3], 0
      %s22 = sshll.u32 %s0, 4
      %s23 = int_to_ptr.hbm [resolvable:$true] %s22
      %s24 = sshll.u32 [#allocation2], 4
      %s25 = int_to_ptr.vmem [resolvable:$true] %s24
      %27 = dma.hbm_to_vmem [thread:$0]  %s23, 128, %s25, [#allocation3]
    $region5: #{tpu_custom_call.1} parent=1 // pred_fallthru
      _
    // Predicated region
    $region6: #{tpu_custom_call.1} parent=1 // pred_check
      _
    $region7: #{tpu_custom_call.1} parent=1 // pred_check_branch
      %29 = sbr.rel (0) target = $region9
    $region8: #{tpu_custom_call.1} parent=1 // pred_region
      %31 = vsyncadd [#allocation6], 0
      %s32 = sshll.u32 %s1, 4
      %s33 = int_to_ptr.hbm [resolvable:$true] %s32
      %s34 = sshll.u32 [#allocation5], 4
      %s35 = int_to_ptr.vmem [resolvable:$true] %s34
      %40 = dma.hbm_to_vmem [thread:$0]  %s33, 8192, %s35, [#allocation6], 512, 512, 32
    $region9: #{tpu_custom_call.1} parent=1 // pred_fallthru
      _
    // Predicated region
    $region10: #{tpu_custom_call.1} parent=1 // pred_check
      _
    $region11: #{tpu_custom_call.1} parent=1 // pred_check_branch
      %42 = sbr.rel (0) target = $region13
    $region12: #{tpu_custom_call.1} parent=1 // pred_region
      %44 = vsyncadd [#allocation6], 0
      %s46 = sshll.u32 %s2, 4
      %s47 = int_to_ptr.hbm [resolvable:$true] %s46
      %s48 = sshll.u32 [#allocation7], 4
      %s49 = int_to_ptr.vmem [resolvable:$true] %s48
      %51 = dma.hbm_to_vmem [thread:$0]  %s47, 64, %s49, [#allocation6]
    $region13: #{tpu_custom_call.1} parent=1 // pred_fallthru
      _
    // Predicated region
    $region14: #{tpu_custom_call.1} parent=1 // pred_check
      _
    $region15: #{tpu_custom_call.1} parent=1 // pred_check_branch
      %53 = sbr.rel (0) target = $region17
    $region16: #{tpu_custom_call.1} parent=1 // pred_region
      %55 = vsyncadd [#allocation9], 0
      %s56 = sshll.u32 %s3, 4
      %s57 = int_to_ptr.hbm [resolvable:$true] %s56
      %s58 = sshll.u32 [#allocation8], 4
      %s59 = int_to_ptr.vmem [resolvable:$true] %s58
      %64 = dma.hbm_to_vmem [thread:$0]  %s57, 32768, %s59, [#allocation9], 512, 512, 32
    $region17: #{tpu_custom_call.1} parent=1 // pred_fallthru
      _
    // Predicated region
    $region18: #{tpu_custom_call.1} parent=1 // pred_check
      _
    $region19: #{tpu_custom_call.1} parent=1 // pred_check_branch
      %66 = sbr.rel (0) target = $region21
    $region20: #{tpu_custom_call.1} parent=1 // pred_region
      %68 = vsyncadd [#allocation9], 0
      %s70 = sshll.u32 %s4, 4
      %s71 = int_to_ptr.hbm [resolvable:$true] %s70
      %s72 = sshll.u32 [#allocation10], 4
      %s73 = int_to_ptr.vmem [resolvable:$true] %s72
      %75 = dma.hbm_to_vmem [thread:$0]  %s71, 64, %s73, [#allocation9]
    $region21: #{tpu_custom_call.1} parent=1 // pred_fallthru
      _
    // Predicated region
    $region22: #{tpu_custom_call.1} parent=1 // pred_check
      _
    $region23: #{tpu_custom_call.1} parent=1 // pred_check_branch
      %77 = sbr.rel (0) target = $region25
    $region24: #{tpu_custom_call.1} parent=1 // pred_region
      %79 = vsyncadd [#allocation12], 0
      %s80 = sshll.u32 %s5, 4
      %s81 = int_to_ptr.hbm [resolvable:$true] %s80
      %s82 = sshll.u32 [#allocation11], 4
      %s83 = int_to_ptr.vmem [resolvable:$true] %s82
      %88 = dma.hbm_to_vmem [thread:$0]  %s81, 8192, %s83, [#allocation12], 128, 128, 8
    $region25: #{tpu_custom_call.1} parent=1 // pred_fallthru
      _
    // Predicated region
    $region26: #{tpu_custom_call.1} parent=1 // pred_check
      _
    $region27: #{tpu_custom_call.1} parent=1 // pred_check_branch
      %90 = sbr.rel (0) target = $region29
    $region28: #{tpu_custom_call.1} parent=1 // pred_region
      _
    $region29: #{tpu_custom_call.1} parent=1 // pred_fallthru
      _
    // Predicated region
    $region30: #{tpu_custom_call.1} parent=1 // pred_check
      _
    $region31: #{tpu_custom_call.1} parent=1 // pred_check_branch
      %92 = sbr.rel (0) target = $region33
    $region32: #{tpu_custom_call.1} parent=1 // pred_region
      %94 = dma.done [#allocation3], 128
    $region33: #{tpu_custom_call.1} parent=1 // pred_fallthru
      _
    // Predicated region
    $region34: #{tpu_custom_call.1} parent=1 // pred_check
      _
    $region35: #{tpu_custom_call.1} parent=1 // pred_check_branch
      %96 = sbr.rel (0) target = $region37
    $region36: #{tpu_custom_call.1} parent=1 // pred_region
      %98 = dma.done [#allocation6], 8192
    $region37: #{tpu_custom_call.1} parent=1 // pred_fallthru
      _
    // Predicated region
    $region38: #{tpu_custom_call.1} parent=1 // pred_check
      _
    $region39: #{tpu_custom_call.1} parent=1 // pred_check_branch
      %100 = sbr.rel (0) target = $region41
    $region40: #{tpu_custom_call.1} parent=1 // pred_region
      %102 = dma.done [#allocation6], 64
    $region41: #{tpu_custom_call.1} parent=1 // pred_fallthru
      _
    // Predicated region
    $region42: #{tpu_custom_call.1} parent=1 // pred_check
      _
    $region43: #{tpu_custom_call.1} parent=1 // pred_check_branch
      %104 = sbr.rel (0) target = $region45
    $region44: #{tpu_custom_call.1} parent=1 // pred_region
      %106 = dma.done [#allocation9], 32768
    $region45: #{tpu_custom_call.1} parent=1 // pred_fallthru
      _
    // Predicated region
    $region46: #{tpu_custom_call.1} parent=1 // pred_check
      _
    $region47: #{tpu_custom_call.1} parent=1 // pred_check_branch
      %108 = sbr.rel (0) target = $region49
    $region48: #{tpu_custom_call.1} parent=1 // pred_region
      %110 = dma.done [#allocation9], 64
    $region49: #{tpu_custom_call.1} parent=1 // pred_fallthru
      _
    // Predicated region
    $region50: #{tpu_custom_call.1} parent=1 // pred_check
      _
    $region51: #{tpu_custom_call.1} parent=1 // pred_check_branch
      %112 = sbr.rel (0) target = $region53
    $region52: #{tpu_custom_call.1} parent=1 // pred_region
      %114 = dma.done [#allocation12], 8192
    $region53: #{tpu_custom_call.1} parent=1 // pred_fallthru
      _
    %v115 = vld [vmem:[#allocation2] sm:$0xff]
    %v116 = vld [vmem:[#allocation5] sm:$0xff]
    %v117 = vld [vmem:[#allocation5 + $0x8] sm:$0xff]
    %v118 = vld [vmem:[#allocation5 + $0x10] sm:$0xff]
    %v119 = vld [vmem:[#allocation5 + $0x18] sm:$0xff]
    %v120 = vld [vmem:[#allocation5 + $0x20] sm:$0xff]
    %v121 = vld [vmem:[#allocation5 + $0x28] sm:$0xff]
    %v122 = vld [vmem:[#allocation5 + $0x30] sm:$0xff]
    %v123 = vld [vmem:[#allocation5 + $0x38] sm:$0xff]
    %v124 = vld [vmem:[#allocation5 + $0x40] sm:$0xff]
    %v125 = vld [vmem:[#allocation5 + $0x48] sm:$0xff]
    %v126 = vld [vmem:[#allocation5 + $0x50] sm:$0xff]
    %v127 = vld [vmem:[#allocation5 + $0x58] sm:$0xff]
    %v128 = vld [vmem:[#allocation5 + $0x60] sm:$0xff]
    %v129 = vld [vmem:[#allocation5 + $0x68] sm:$0xff]
    %v130 = vld [vmem:[#allocation5 + $0x70] sm:$0xff]
    %v131 = vld [vmem:[#allocation5 + $0x78] sm:$0xff]
    %v132 = vld [vmem:[#allocation5 + $0x80] sm:$0xff]
    %v133 = vld [vmem:[#allocation5 + $0x88] sm:$0xff]
    %v134 = vld [vmem:[#allocation5 + $0x90] sm:$0xff]
    %v135 = vld [vmem:[#allocation5 + $0x98] sm:$0xff]
    %v136 = vld [vmem:[#allocation5 + $0xa0] sm:$0xff]
    %v137 = vld [vmem:[#allocation5 + $0xa8] sm:$0xff]
    %v138 = vld [vmem:[#allocation5 + $0xb0] sm:$0xff]
    %v139 = vld [vmem:[#allocation5 + $0xb8] sm:$0xff]
    %v140 = vld [vmem:[#allocation5 + $0xc0] sm:$0xff]
    %v141 = vld [vmem:[#allocation5 + $0xc8] sm:$0xff]
    %v142 = vld [vmem:[#allocation5 + $0xd0] sm:$0xff]
    %v143 = vld [vmem:[#allocation5 + $0xd8] sm:$0xff]
    %v144 = vld [vmem:[#allocation5 + $0xe0] sm:$0xff]
    %v145 = vld [vmem:[#allocation5 + $0xe8] sm:$0xff]
    %v146 = vld [vmem:[#allocation5 + $0xf0] sm:$0xff]
    %v147 = vld [vmem:[#allocation5 + $0xf8] sm:$0xff]
    %v148 = vld [vmem:[#allocation5 + $0x100] sm:$0xff]
    %v149 = vld [vmem:[#allocation5 + $0x108] sm:$0xff]
    %v150 = vld [vmem:[#allocation5 + $0x110] sm:$0xff]
    %v151 = vld [vmem:[#allocation5 + $0x118] sm:$0xff]
    %v152 = vld [vmem:[#allocation5 + $0x120] sm:$0xff]
    %v153 = vld [vmem:[#allocation5 + $0x128] sm:$0xff]
    %v154 = vld [vmem:[#allocation5 + $0x130] sm:$0xff]
    %v155 = vld [vmem:[#allocation5 + $0x138] sm:$0xff]
    %v156 = vld [vmem:[#allocation5 + $0x140] sm:$0xff]
    %v157 = vld [vmem:[#allocation5 + $0x148] sm:$0xff]
    %v158 = vld [vmem:[#allocation5 + $0x150] sm:$0xff]
    %v159 = vld [vmem:[#allocation5 + $0x158] sm:$0xff]
    %v160 = vld [vmem:[#allocation5 + $0x160] sm:$0xff]
    %v161 = vld [vmem:[#allocation5 + $0x168] sm:$0xff]
    %v162 = vld [vmem:[#allocation5 + $0x170] sm:$0xff]
    %v163 = vld [vmem:[#allocation5 + $0x178] sm:$0xff]
    %v164 = vld [vmem:[#allocation5 + $0x180] sm:$0xff]
    %v165 = vld [vmem:[#allocation5 + $0x188] sm:$0xff]
    %v166 = vld [vmem:[#allocation5 + $0x190] sm:$0xff]
    %v167 = vld [vmem:[#allocation5 + $0x198] sm:$0xff]
    %v168 = vld [vmem:[#allocation5 + $0x1a0] sm:$0xff]
    %v169 = vld [vmem:[#allocation5 + $0x1a8] sm:$0xff]
    %v170 = vld [vmem:[#allocation5 + $0x1b0] sm:$0xff]
    %v171 = vld [vmem:[#allocation5 + $0x1b8] sm:$0xff]
    %v172 = vld [vmem:[#allocation5 + $0x1c0] sm:$0xff]
    %v173 = vld [vmem:[#allocation5 + $0x1c8] sm:$0xff]
    %v174 = vld [vmem:[#allocation5 + $0x1d0] sm:$0xff]
    %v175 = vld [vmem:[#allocation5 + $0x1d8] sm:$0xff]
    %v176 = vld [vmem:[#allocation5 + $0x1e0] sm:$0xff]
    %v177 = vld [vmem:[#allocation5 + $0x1e8] sm:$0xff]
    %v178 = vld [vmem:[#allocation5 + $0x1f0] sm:$0xff]
    %v179 = vld [vmem:[#allocation5 + $0x1f8] sm:$0xff]
    %v180 = vld [vmem:[#allocation7] sm:$0xf]
    %v182 = vperm.slane %v180, 0
    %v183 = vperm.slane %v180, 1
    %v184 = vperm.slane %v180, 2
    %v185 = vperm.slane %v180, 3
    %190 = vmatpush.msra.mxu0 %v176
    %191 = vmatpush.msra.mxu0 %v172
    %192 = vmatpush.msra.mxu0 %v168
    %193 = vmatpush.msra.mxu0 %v164
    %194 = vmatpush.msra.mxu0 %v160
    %195 = vmatpush.msra.mxu0 %v156
    %196 = vmatpush.msra.mxu0 %v152
    %197 = vmatpush.msra.mxu0 %v148
    %198 = vmatpush.msra.mxu0 %v144
    %199 = vmatpush.msra.mxu0 %v140
    %200 = vmatpush.msra.mxu0 %v136
    %201 = vmatpush.msra.mxu0 %v132
    %202 = vmatpush.msra.mxu0 %v128
    %203 = vmatpush.msra.mxu0 %v124
    %204 = vmatpush.msra.mxu0 %v120
    %205 = vmatpush.msra.mxu0 %v116
    %206 = vmatmul.f32.gmra.mxu0 %v115
    %v207 = vpop.f32.mrf.mxu0
    %v208 = vadd.f32 %v182, %v207
    %209 = vdwg.mxu0
    %210 = vmatpush.msra.mxu0 %v177
    %211 = vmatpush.msra.mxu0 %v173
    %212 = vmatpush.msra.mxu0 %v169
    %213 = vmatpush.msra.mxu0 %v165
    %214 = vmatpush.msra.mxu0 %v161
    %215 = vmatpush.msra.mxu0 %v157
    %216 = vmatpush.msra.mxu0 %v153
    %217 = vmatpush.msra.mxu0 %v149
    %218 = vmatpush.msra.mxu0 %v145
    %219 = vmatpush.msra.mxu0 %v141
    %220 = vmatpush.msra.mxu0 %v137
    %221 = vmatpush.msra.mxu0 %v133
    %222 = vmatpush.msra.mxu0 %v129
    %223 = vmatpush.msra.mxu0 %v125
    %224 = vmatpush.msra.mxu0 %v121
    %225 = vmatpush.msra.mxu0 %v117
    %226 = vmatmul.f32.gmra.mxu0 %v115
    %v227 = vpop.f32.mrf.mxu0
    %v228 = vadd.f32 %v183, %v227
    %229 = vdwg.mxu0
    %230 = vmatpush.msra.mxu0 %v178
    %231 = vmatpush.msra.mxu0 %v174
    %232 = vmatpush.msra.mxu0 %v170
    %233 = vmatpush.msra.mxu0 %v166
    %234 = vmatpush.msra.mxu0 %v162
    %235 = vmatpush.msra.mxu0 %v158
    %236 = vmatpush.msra.mxu0 %v154
    %237 = vmatpush.msra.mxu0 %v150
    %238 = vmatpush.msra.mxu0 %v146
    %239 = vmatpush.msra.mxu0 %v142
    %240 = vmatpush.msra.mxu0 %v138
    %241 = vmatpush.msra.mxu0 %v134
    %242 = vmatpush.msra.mxu0 %v130
    %243 = vmatpush.msra.mxu0 %v126
    %244 = vmatpush.msra.mxu0 %v122
    %245 = vmatpush.msra.mxu0 %v118
    %246 = vmatmul.f32.gmra.mxu0 %v115
    %v247 = vpop.f32.mrf.mxu0
    %v248 = vadd.f32 %v184, %v247
    %249 = vdwg.mxu0
    %250 = vmatpush.msra.mxu0 %v179
    %251 = vmatpush.msra.mxu0 %v175
    %252 = vmatpush.msra.mxu0 %v171
    %253 = vmatpush.msra.mxu0 %v167
    %254 = vmatpush.msra.mxu0 %v163
    %255 = vmatpush.msra.mxu0 %v159
    %256 = vmatpush.msra.mxu0 %v155
    %257 = vmatpush.msra.mxu0 %v151
    %258 = vmatpush.msra.mxu0 %v147
    %259 = vmatpush.msra.mxu0 %v143
    %260 = vmatpush.msra.mxu0 %v139
    %261 = vmatpush.msra.mxu0 %v135
    %262 = vmatpush.msra.mxu0 %v131
    %263 = vmatpush.msra.mxu0 %v127
    %264 = vmatpush.msra.mxu0 %v123
    %265 = vmatpush.msra.mxu0 %v119
    %266 = vmatmul.f32.gmra.mxu0 %v115
    %v267 = vpop.f32.mrf.mxu0
    %v268 = vadd.f32 %v185, %v267
    %269 = vdwg.mxu0
    %v270 = vmax.f32 %v208, 0.0
    %v271 = vmax.f32 %v228, 0.0
    %v272 = vmax.f32 %v248, 0.0
    %v273 = vmax.f32 %v268, 0.0
    %v274 = vld [vmem:[#allocation8] sm:$0xff]
    %v275 = vld [vmem:[#allocation8 + $0x8] sm:$0xff]
    %v276 = vld [vmem:[#allocation8 + $0x10] sm:$0xff]
    %v277 = vld [vmem:[#allocation8 + $0x18] sm:$0xff]
    %v278 = vld [vmem:[#allocation8 + $0x20] sm:$0xff]
    %v279 = vld [vmem:[#allocation8 + $0x28] sm:$0xff]
    %v280 = vld [vmem:[#allocation8 + $0x30] sm:$0xff]
    %v281 = vld [vmem:[#allocation8 + $0x38] sm:$0xff]
    %v282 = vld [vmem:[#allocation8 + $0x40] sm:$0xff]
    %v283 = vld [vmem:[#allocation8 + $0x48] sm:$0xff]
    %v284 = vld [vmem:[#allocation8 + $0x50] sm:$0xff]
    %v285 = vld [vmem:[#allocation8 + $0x58] sm:$0xff]
    %v286 = vld [vmem:[#allocation8 + $0x60] sm:$0xff]
    %v287 = vld [vmem:[#allocation8 + $0x68] sm:$0xff]
    %v288 = vld [vmem:[#allocation8 + $0x70] sm:$0xff]
    %v289 = vld [vmem:[#allocation8 + $0x78] sm:$0xff]
    %v290 = vld [vmem:[#allocation8 + $0x80] sm:$0xff]
    %v291 = vld [vmem:[#allocation8 + $0x88] sm:$0xff]
    %v292 = vld [vmem:[#allocation8 + $0x90] sm:$0xff]
    %v293 = vld [vmem:[#allocation8 + $0x98] sm:$0xff]
    %v294 = vld [vmem:[#allocation8 + $0xa0] sm:$0xff]
    %v295 = vld [vmem:[#allocation8 + $0xa8] sm:$0xff]
    %v296 = vld [vmem:[#allocation8 + $0xb0] sm:$0xff]
    %v297 = vld [vmem:[#allocation8 + $0xb8] sm:$0xff]
    %v298 = vld [vmem:[#allocation8 + $0xc0] sm:$0xff]
    %v299 = vld [vmem:[#allocation8 + $0xc8] sm:$0xff]
    %v300 = vld [vmem:[#allocation8 + $0xd0] sm:$0xff]
    %v301 = vld [vmem:[#allocation8 + $0xd8] sm:$0xff]
    %v302 = vld [vmem:[#allocation8 + $0xe0] sm:$0xff]
    %v303 = vld [vmem:[#allocation8 + $0xe8] sm:$0xff]
    %v304 = vld [vmem:[#allocation8 + $0xf0] sm:$0xff]
    %v305 = vld [vmem:[#allocation8 + $0xf8] sm:$0xff]
    %v306 = vld [vmem:[#allocation8 + $0x100] sm:$0xff]
    %v307 = vld [vmem:[#allocation8 + $0x108] sm:$0xff]
    %v308 = vld [vmem:[#allocation8 + $0x110] sm:$0xff]
    %v309 = vld [vmem:[#allocation8 + $0x118] sm:$0xff]
    %v310 = vld [vmem:[#allocation8 + $0x120] sm:$0xff]
    %v311 = vld [vmem:[#allocation8 + $0x128] sm:$0xff]
    %v312 = vld [vmem:[#allocation8 + $0x130] sm:$0xff]
    %v313 = vld [vmem:[#allocation8 + $0x138] sm:$0xff]
    %v314 = vld [vmem:[#allocation8 + $0x140] sm:$0xff]
    %v315 = vld [vmem:[#allocation8 + $0x148] sm:$0xff]
    %v316 = vld [vmem:[#allocation8 + $0x150] sm:$0xff]
    %v317 = vld [vmem:[#allocation8 + $0x158] sm:$0xff]
    %v318 = vld [vmem:[#allocation8 + $0x160] sm:$0xff]
    %v319 = vld [vmem:[#allocation8 + $0x168] sm:$0xff]
    %v320 = vld [vmem:[#allocation8 + $0x170] sm:$0xff]
    %v321 = vld [vmem:[#allocation8 + $0x178] sm:$0xff]
    %v322 = vld [vmem:[#allocation8 + $0x180] sm:$0xff]
    %v323 = vld [vmem:[#allocation8 + $0x188] sm:$0xff]
    %v324 = vld [vmem:[#allocation8 + $0x190] sm:$0xff]
    %v325 = vld [vmem:[#allocation8 + $0x198] sm:$0xff]
    %v326 = vld [vmem:[#allocation8 + $0x1a0] sm:$0xff]
    %v327 = vld [vmem:[#allocation8 + $0x1a8] sm:$0xff]
    %v328 = vld [vmem:[#allocation8 + $0x1b0] sm:$0xff]
    %v329 = vld [vmem:[#allocation8 + $0x1b8] sm:$0xff]
    %v330 = vld [vmem:[#allocation8 + $0x1c0] sm:$0xff]
    %v331 = vld [vmem:[#allocation8 + $0x1c8] sm:$0xff]
    %v332 = vld [vmem:[#allocation8 + $0x1d0] sm:$0xff]
    %v333 = vld [vmem:[#allocation8 + $0x1d8] sm:$0xff]
    %v334 = vld [vmem:[#allocation8 + $0x1e0] sm:$0xff]
    %v335 = vld [vmem:[#allocation8 + $0x1e8] sm:$0xff]
    %v336 = vld [vmem:[#allocation8 + $0x1f0] sm:$0xff]
    %v337 = vld [vmem:[#allocation8 + $0x1f8] sm:$0xff]
    %v338 = vld [vmem:[#allocation8 + $0x200] sm:$0xff]
    %v339 = vld [vmem:[#allocation8 + $0x208] sm:$0xff]
    %v340 = vld [vmem:[#allocation8 + $0x210] sm:$0xff]
    %v341 = vld [vmem:[#allocation8 + $0x218] sm:$0xff]
    %v342 = vld [vmem:[#allocation8 + $0x220] sm:$0xff]
    %v343 = vld [vmem:[#allocation8 + $0x228] sm:$0xff]
    %v344 = vld [vmem:[#allocation8 + $0x230] sm:$0xff]
    %v345 = vld [vmem:[#allocation8 + $0x238] sm:$0xff]
    %v346 = vld [vmem:[#allocation8 + $0x240] sm:$0xff]
    %v347 = vld [vmem:[#allocation8 + $0x248] sm:$0xff]
    %v348 = vld [vmem:[#allocation8 + $0x250] sm:$0xff]
    %v349 = vld [vmem:[#allocation8 + $0x258] sm:$0xff]
    %v350 = vld [vmem:[#allocation8 + $0x260] sm:$0xff]
    %v351 = vld [vmem:[#allocation8 + $0x268] sm:$0xff]
    %v352 = vld [vmem:[#allocation8 + $0x270] sm:$0xff]
    %v353 = vld [vmem:[#allocation8 + $0x278] sm:$0xff]
    %v354 = vld [vmem:[#allocation8 + $0x280] sm:$0xff]
    %v355 = vld [vmem:[#allocation8 + $0x288] sm:$0xff]
    %v356 = vld [vmem:[#allocation8 + $0x290] sm:$0xff]
    %v357 = vld [vmem:[#allocation8 + $0x298] sm:$0xff]
    %v358 = vld [vmem:[#allocation8 + $0x2a0] sm:$0xff]
    %v359 = vld [vmem:[#allocation8 + $0x2a8] sm:$0xff]
    %v360 = vld [vmem:[#allocation8 + $0x2b0] sm:$0xff]
    %v361 = vld [vmem:[#allocation8 + $0x2b8] sm:$0xff]
    %v362 = vld [vmem:[#allocation8 + $0x2c0] sm:$0xff]
    %v363 = vld [vmem:[#allocation8 + $0x2c8] sm:$0xff]
    %v364 = vld [vmem:[#allocation8 + $0x2d0] sm:$0xff]
    %v365 = vld [vmem:[#allocation8 + $0x2d8] sm:$0xff]
    %v366 = vld [vmem:[#allocation8 + $0x2e0] sm:$0xff]
    %v367 = vld [vmem:[#allocation8 + $0x2e8] sm:$0xff]
    %v368 = vld [vmem:[#allocation8 + $0x2f0] sm:$0xff]
    %v369 = vld [vmem:[#allocation8 + $0x2f8] sm:$0xff]
    %v370 = vld [vmem:[#allocation8 + $0x300] sm:$0xff]
    %v371 = vld [vmem:[#allocation8 + $0x308] sm:$0xff]
    %v372 = vld [vmem:[#allocation8 + $0x310] sm:$0xff]
    %v373 = vld [vmem:[#allocation8 + $0x318] sm:$0xff]
    %v374 = vld [vmem:[#allocation8 + $0x320] sm:$0xff]
    %v375 = vld [vmem:[#allocation8 + $0x328] sm:$0xff]
    %v376 = vld [vmem:[#allocation8 + $0x330] sm:$0xff]
    %v377 = vld [vmem:[#allocation8 + $0x338] sm:$0xff]
    %v378 = vld [vmem:[#allocation8 + $0x340] sm:$0xff]
    %v379 = vld [vmem:[#allocation8 + $0x348] sm:$0xff]
    %v380 = vld [vmem:[#allocation8 + $0x350] sm:$0xff]
    %v381 = vld [vmem:[#allocation8 + $0x358] sm:$0xff]
    %v382 = vld [vmem:[#allocation8 + $0x360] sm:$0xff]
    %v383 = vld [vmem:[#allocation8 + $0x368] sm:$0xff]
    %v384 = vld [vmem:[#allocation8 + $0x370] sm:$0xff]
    %v385 = vld [vmem:[#allocation8 + $0x378] sm:$0xff]
    %v386 = vld [vmem:[#allocation8 + $0x380] sm:$0xff]
    %v387 = vld [vmem:[#allocation8 + $0x388] sm:$0xff]
    %v388 = vld [vmem:[#allocation8 + $0x390] sm:$0xff]
    %v389 = vld [vmem:[#allocation8 + $0x398] sm:$0xff]
    %v390 = vld [vmem:[#allocation8 + $0x3a0] sm:$0xff]
    %v391 = vld [vmem:[#allocation8 + $0x3a8] sm:$0xff]
    %v392 = vld [vmem:[#allocation8 + $0x3b0] sm:$0xff]
    %v393 = vld [vmem:[#allocation8 + $0x3b8] sm:$0xff]
    %v394 = vld [vmem:[#allocation8 + $0x3c0] sm:$0xff]
    %v395 = vld [vmem:[#allocation8 + $0x3c8] sm:$0xff]
    %v396 = vld [vmem:[#allocation8 + $0x3d0] sm:$0xff]
    %v397 = vld [vmem:[#allocation8 + $0x3d8] sm:$0xff]
    %v398 = vld [vmem:[#allocation8 + $0x3e0] sm:$0xff]
    %v399 = vld [vmem:[#allocation8 + $0x3e8] sm:$0xff]
    %v400 = vld [vmem:[#allocation8 + $0x3f0] sm:$0xff]
    %v401 = vld [vmem:[#allocation8 + $0x3f8] sm:$0xff]
    %v402 = vld [vmem:[#allocation8 + $0x400] sm:$0xff]
    %v403 = vld [vmem:[#allocation8 + $0x408] sm:$0xff]
    %v404 = vld [vmem:[#allocation8 + $0x410] sm:$0xff]
    %v405 = vld [vmem:[#allocation8 + $0x418] sm:$0xff]
    %v406 = vld [vmem:[#allocation8 + $0x420] sm:$0xff]
    %v407 = vld [vmem:[#allocation8 + $0x428] sm:$0xff]
    %v408 = vld [vmem:[#allocation8 + $0x430] sm:$0xff]
    %v409 = vld [vmem:[#allocation8 + $0x438] sm:$0xff]
    %v410 = vld [vmem:[#allocation8 + $0x440] sm:$0xff]
    %v411 = vld [vmem:[#allocation8 + $0x448] sm:$0xff]
    %v412 = vld [vmem:[#allocation8 + $0x450] sm:$0xff]
    %v413 = vld [vmem:[#allocation8 + $0x458] sm:$0xff]
    %v414 = vld [vmem:[#allocation8 + $0x460] sm:$0xff]
    %v415 = vld [vmem:[#allocation8 + $0x468] sm:$0xff]
    %v416 = vld [vmem:[#allocation8 + $0x470] sm:$0xff]
    %v417 = vld [vmem:[#allocation8 + $0x478] sm:$0xff]
    %v418 = vld [vmem:[#allocation8 + $0x480] sm:$0xff]
    %v419 = vld [vmem:[#allocation8 + $0x488] sm:$0xff]
    %v420 = vld [vmem:[#allocation8 + $0x490] sm:$0xff]
    %v421 = vld [vmem:[#allocation8 + $0x498] sm:$0xff]
    %v422 = vld [vmem:[#allocation8 + $0x4a0] sm:$0xff]
    %v423 = vld [vmem:[#allocation8 + $0x4a8] sm:$0xff]
    %v424 = vld [vmem:[#allocation8 + $0x4b0] sm:$0xff]
    %v425 = vld [vmem:[#allocation8 + $0x4b8] sm:$0xff]
    %v426 = vld [vmem:[#allocation8 + $0x4c0] sm:$0xff]
    %v427 = vld [vmem:[#allocation8 + $0x4c8] sm:$0xff]
    %v428 = vld [vmem:[#allocation8 + $0x4d0] sm:$0xff]
    %v429 = vld [vmem:[#allocation8 + $0x4d8] sm:$0xff]
    %v430 = vld [vmem:[#allocation8 + $0x4e0] sm:$0xff]
    %v431 = vld [vmem:[#allocation8 + $0x4e8] sm:$0xff]
    %v432 = vld [vmem:[#allocation8 + $0x4f0] sm:$0xff]
    %v433 = vld [vmem:[#allocation8 + $0x4f8] sm:$0xff]
    %v434 = vld [vmem:[#allocation8 + $0x500] sm:$0xff]
    %v435 = vld [vmem:[#allocation8 + $0x508] sm:$0xff]
    %v436 = vld [vmem:[#allocation8 + $0x510] sm:$0xff]
    %v437 = vld [vmem:[#allocation8 + $0x518] sm:$0xff]
    %v438 = vld [vmem:[#allocation8 + $0x520] sm:$0xff]
    %v439 = vld [vmem:[#allocation8 + $0x528] sm:$0xff]
    %v440 = vld [vmem:[#allocation8 + $0x530] sm:$0xff]
    %v441 = vld [vmem:[#allocation8 + $0x538] sm:$0xff]
    %v442 = vld [vmem:[#allocation8 + $0x540] sm:$0xff]
    %v443 = vld [vmem:[#allocation8 + $0x548] sm:$0xff]
    %v444 = vld [vmem:[#allocation8 + $0x550] sm:$0xff]
    %v445 = vld [vmem:[#allocation8 + $0x558] sm:$0xff]
    %v446 = vld [vmem:[#allocation8 + $0x560] sm:$0xff]
    %v447 = vld [vmem:[#allocation8 + $0x568] sm:$0xff]
    %v448 = vld [vmem:[#allocation8 + $0x570] sm:$0xff]
    %v449 = vld [vmem:[#allocation8 + $0x578] sm:$0xff]
    %v450 = vld [vmem:[#allocation8 + $0x580] sm:$0xff]
    %v451 = vld [vmem:[#allocation8 + $0x588] sm:$0xff]
    %v452 = vld [vmem:[#allocation8 + $0x590] sm:$0xff]
    %v453 = vld [vmem:[#allocation8 + $0x598] sm:$0xff]
    %v454 = vld [vmem:[#allocation8 + $0x5a0] sm:$0xff]
    %v455 = vld [vmem:[#allocation8 + $0x5a8] sm:$0xff]
    %v456 = vld [vmem:[#allocation8 + $0x5b0] sm:$0xff]
    %v457 = vld [vmem:[#allocation8 + $0x5b8] sm:$0xff]
    %v458 = vld [vmem:[#allocation8 + $0x5c0] sm:$0xff]
    %v459 = vld [vmem:[#allocation8 + $0x5c8] sm:$0xff]
    %v460 = vld [vmem:[#allocation8 + $0x5d0] sm:$0xff]
    %v461 = vld [vmem:[#allocation8 + $0x5d8] sm:$0xff]
    %v462 = vld [vmem:[#allocation8 + $0x5e0] sm:$0xff]
    %v463 = vld [vmem:[#allocation8 + $0x5e8] sm:$0xff]
    %v464 = vld [vmem:[#allocation8 + $0x5f0] sm:$0xff]
    %v465 = vld [vmem:[#allocation8 + $0x5f8] sm:$0xff]
    %v466 = vld [vmem:[#allocation8 + $0x600] sm:$0xff]
    %v467 = vld [vmem:[#allocation8 + $0x608] sm:$0xff]
    %v468 = vld [vmem:[#allocation8 + $0x610] sm:$0xff]
    %v469 = vld [vmem:[#allocation8 + $0x618] sm:$0xff]
    %v470 = vld [vmem:[#allocation8 + $0x620] sm:$0xff]
    %v471 = vld [vmem:[#allocation8 + $0x628] sm:$0xff]
    %v472 = vld [vmem:[#allocation8 + $0x630] sm:$0xff]
    %v473 = vld [vmem:[#allocation8 + $0x638] sm:$0xff]
    %v474 = vld [vmem:[#allocation8 + $0x640] sm:$0xff]
    %v475 = vld [vmem:[#allocation8 + $0x648] sm:$0xff]
    %v476 = vld [vmem:[#allocation8 + $0x650] sm:$0xff]
    %v477 = vld [vmem:[#allocation8 + $0x658] sm:$0xff]
    %v478 = vld [vmem:[#allocation8 + $0x660] sm:$0xff]
    %v479 = vld [vmem:[#allocation8 + $0x668] sm:$0xff]
    %v480 = vld [vmem:[#allocation8 + $0x670] sm:$0xff]
    %v481 = vld [vmem:[#allocation8 + $0x678] sm:$0xff]
    %v482 = vld [vmem:[#allocation8 + $0x680] sm:$0xff]
    %v483 = vld [vmem:[#allocation8 + $0x688] sm:$0xff]
    %v484 = vld [vmem:[#allocation8 + $0x690] sm:$0xff]
    %v485 = vld [vmem:[#allocation8 + $0x698] sm:$0xff]
    %v486 = vld [vmem:[#allocation8 + $0x6a0] sm:$0xff]
    %v487 = vld [vmem:[#allocation8 + $0x6a8] sm:$0xff]
    %v488 = vld [vmem:[#allocation8 + $0x6b0] sm:$0xff]
    %v489 = vld [vmem:[#allocation8 + $0x6b8] sm:$0xff]
    %v490 = vld [vmem:[#allocation8 + $0x6c0] sm:$0xff]
    %v491 = vld [vmem:[#allocation8 + $0x6c8] sm:$0xff]
    %v492 = vld [vmem:[#allocation8 + $0x6d0] sm:$0xff]
    %v493 = vld [vmem:[#allocation8 + $0x6d8] sm:$0xff]
    %v494 = vld [vmem:[#allocation8 + $0x6e0] sm:$0xff]
    %v495 = vld [vmem:[#allocation8 + $0x6e8] sm:$0xff]
    %v496 = vld [vmem:[#allocation8 + $0x6f0] sm:$0xff]
    %v497 = vld [vmem:[#allocation8 + $0x6f8] sm:$0xff]
    %v498 = vld [vmem:[#allocation8 + $0x700] sm:$0xff]
    %v499 = vld [vmem:[#allocation8 + $0x708] sm:$0xff]
    %v500 = vld [vmem:[#allocation8 + $0x710] sm:$0xff]
    %v501 = vld [vmem:[#allocation8 + $0x718] sm:$0xff]
    %v502 = vld [vmem:[#allocation8 + $0x720] sm:$0xff]
    %v503 = vld [vmem:[#allocation8 + $0x728] sm:$0xff]
    %v504 = vld [vmem:[#allocation8 + $0x730] sm:$0xff]
    %v505 = vld [vmem:[#allocation8 + $0x738] sm:$0xff]
    %v506 = vld [vmem:[#allocation8 + $0x740] sm:$0xff]
    %v507 = vld [vmem:[#allocation8 + $0x748] sm:$0xff]
    %v508 = vld [vmem:[#allocation8 + $0x750] sm:$0xff]
    %v509 = vld [vmem:[#allocation8 + $0x758] sm:$0xff]
    %v510 = vld [vmem:[#allocation8 + $0x760] sm:$0xff]
    %v511 = vld [vmem:[#allocation8 + $0x768] sm:$0xff]
    %v512 = vld [vmem:[#allocation8 + $0x770] sm:$0xff]
    %v513 = vld [vmem:[#allocation8 + $0x778] sm:$0xff]
    %v514 = vld [vmem:[#allocation8 + $0x780] sm:$0xff]
    %v515 = vld [vmem:[#allocation8 + $0x788] sm:$0xff]
    %v516 = vld [vmem:[#allocation8 + $0x790] sm:$0xff]
    %v517 = vld [vmem:[#allocation8 + $0x798] sm:$0xff]
    %v518 = vld [vmem:[#allocation8 + $0x7a0] sm:$0xff]
    %v519 = vld [vmem:[#allocation8 + $0x7a8] sm:$0xff]
    %v520 = vld [vmem:[#allocation8 + $0x7b0] sm:$0xff]
    %v521 = vld [vmem:[#allocation8 + $0x7b8] sm:$0xff]
    %v522 = vld [vmem:[#allocation8 + $0x7c0] sm:$0xff]
    %v523 = vld [vmem:[#allocation8 + $0x7c8] sm:$0xff]
    %v524 = vld [vmem:[#allocation8 + $0x7d0] sm:$0xff]
    %v525 = vld [vmem:[#allocation8 + $0x7d8] sm:$0xff]
    %v526 = vld [vmem:[#allocation8 + $0x7e0] sm:$0xff]
    %v527 = vld [vmem:[#allocation8 + $0x7e8] sm:$0xff]
    %v528 = vld [vmem:[#allocation8 + $0x7f0] sm:$0xff]
    %v529 = vld [vmem:[#allocation8 + $0x7f8] sm:$0xff]
    %v530 = vld [vmem:[#allocation10] sm:$0xf]
    %v532 = vperm.slane %v530, 0
    %v533 = vperm.slane %v530, 1
    %v534 = vperm.slane %v530, 2
    %v535 = vperm.slane %v530, 3
    %540 = vmatpush.msra.mxu0 %v334
    %541 = vmatpush.msra.mxu0 %v330
    %542 = vmatpush.msra.mxu0 %v326
    %543 = vmatpush.msra.mxu0 %v322
    %544 = vmatpush.msra.mxu0 %v318
    %545 = vmatpush.msra.mxu0 %v314
    %546 = vmatpush.msra.mxu0 %v310
    %547 = vmatpush.msra.mxu0 %v306
    %548 = vmatpush.msra.mxu0 %v302
    %549 = vmatpush.msra.mxu0 %v298
    %550 = vmatpush.msra.mxu0 %v294
    %551 = vmatpush.msra.mxu0 %v290
    %552 = vmatpush.msra.mxu0 %v286
    %553 = vmatpush.msra.mxu0 %v282
    %554 = vmatpush.msra.mxu0 %v278
    %555 = vmatpush.msra.mxu0 %v274
    %556 = vmatmul.f32.gmra.mxu0 %v270
    %v557 = vpop.f32.mrf.mxu0
    %v558 = vadd.f32 %v532, %v557
    %559 = vdwg.mxu0
    %560 = vmatpush.msra.mxu0 %v398
    %561 = vmatpush.msra.mxu0 %v394
    %562 = vmatpush.msra.mxu0 %v390
    %563 = vmatpush.msra.mxu0 %v386
    %564 = vmatpush.msra.mxu0 %v382
    %565 = vmatpush.msra.mxu0 %v378
    %566 = vmatpush.msra.mxu0 %v374
    %567 = vmatpush.msra.mxu0 %v370
    %568 = vmatpush.msra.mxu0 %v366
    %569 = vmatpush.msra.mxu0 %v362
    %570 = vmatpush.msra.mxu0 %v358
    %571 = vmatpush.msra.mxu0 %v354
    %572 = vmatpush.msra.mxu0 %v350
    %573 = vmatpush.msra.mxu0 %v346
    %574 = vmatpush.msra.mxu0 %v342
    %575 = vmatpush.msra.mxu0 %v338
    %576 = vmatmul.f32.gmra.mxu0 %v271
    %v577 = vpop.f32.mrf.mxu0
    %v578 = vadd.f32 %v558, %v577
    %579 = vdwg.mxu0
    %580 = vmatpush.msra.mxu0 %v462
    %581 = vmatpush.msra.mxu0 %v458
    %582 = vmatpush.msra.mxu0 %v454
    %583 = vmatpush.msra.mxu0 %v450
    %584 = vmatpush.msra.mxu0 %v446
    %585 = vmatpush.msra.mxu0 %v442
    %586 = vmatpush.msra.mxu0 %v438
    %587 = vmatpush.msra.mxu0 %v434
    %588 = vmatpush.msra.mxu0 %v430
    %589 = vmatpush.msra.mxu0 %v426
    %590 = vmatpush.msra.mxu0 %v422
    %591 = vmatpush.msra.mxu0 %v418
    %592 = vmatpush.msra.mxu0 %v414
    %593 = vmatpush.msra.mxu0 %v410
    %594 = vmatpush.msra.mxu0 %v406
    %595 = vmatpush.msra.mxu0 %v402
    %596 = vmatmul.f32.gmra.mxu0 %v272
    %v597 = vpop.f32.mrf.mxu0
    %v598 = vadd.f32 %v578, %v597
    %599 = vdwg.mxu0
    %600 = vmatpush.msra.mxu0 %v526
    %601 = vmatpush.msra.mxu0 %v522
    %602 = vmatpush.msra.mxu0 %v518
    %603 = vmatpush.msra.mxu0 %v514
    %604 = vmatpush.msra.mxu0 %v510
    %605 = vmatpush.msra.mxu0 %v506
    %606 = vmatpush.msra.mxu0 %v502
    %607 = vmatpush.msra.mxu0 %v498
    %608 = vmatpush.msra.mxu0 %v494
    %609 = vmatpush.msra.mxu0 %v490
    %610 = vmatpush.msra.mxu0 %v486
    %611 = vmatpush.msra.mxu0 %v482
    %612 = vmatpush.msra.mxu0 %v478
    %613 = vmatpush.msra.mxu0 %v474
    %614 = vmatpush.msra.mxu0 %v470
    %615 = vmatpush.msra.mxu0 %v466
    %616 = vmatmul.f32.gmra.mxu0 %v273
    %v617 = vpop.f32.mrf.mxu0
    %v618 = vadd.f32 %v598, %v617
    %619 = vdwg.mxu0
    %620 = vmatpush.msra.mxu0 %v335
    %621 = vmatpush.msra.mxu0 %v331
    %622 = vmatpush.msra.mxu0 %v327
    %623 = vmatpush.msra.mxu0 %v323
    %624 = vmatpush.msra.mxu0 %v319
    %625 = vmatpush.msra.mxu0 %v315
    %626 = vmatpush.msra.mxu0 %v311
    %627 = vmatpush.msra.mxu0 %v307
    %628 = vmatpush.msra.mxu0 %v303
    %629 = vmatpush.msra.mxu0 %v299
    %630 = vmatpush.msra.mxu0 %v295
    %631 = vmatpush.msra.mxu0 %v291
    %632 = vmatpush.msra.mxu0 %v287
    %633 = vmatpush.msra.mxu0 %v283
    %634 = vmatpush.msra.mxu0 %v279
    %635 = vmatpush.msra.mxu0 %v275
    %636 = vmatmul.f32.gmra.mxu0 %v270
    %v637 = vpop.f32.mrf.mxu0
    %v638 = vadd.f32 %v533, %v637
    %639 = vdwg.mxu0
    %640 = vmatpush.msra.mxu0 %v399
    %641 = vmatpush.msra.mxu0 %v395
    %642 = vmatpush.msra.mxu0 %v391
    %643 = vmatpush.msra.mxu0 %v387
    %644 = vmatpush.msra.mxu0 %v383
    %645 = vmatpush.msra.mxu0 %v379
    %646 = vmatpush.msra.mxu0 %v375
    %647 = vmatpush.msra.mxu0 %v371
    %648 = vmatpush.msra.mxu0 %v367
    %649 = vmatpush.msra.mxu0 %v363
    %650 = vmatpush.msra.mxu0 %v359
    %651 = vmatpush.msra.mxu0 %v355
    %652 = vmatpush.msra.mxu0 %v351
    %653 = vmatpush.msra.mxu0 %v347
    %654 = vmatpush.msra.mxu0 %v343
    %655 = vmatpush.msra.mxu0 %v339
    %656 = vmatmul.f32.gmra.mxu0 %v271
    %v657 = vpop.f32.mrf.mxu0
    %v658 = vadd.f32 %v638, %v657
    %659 = vdwg.mxu0
    %660 = vmatpush.msra.mxu0 %v463
    %661 = vmatpush.msra.mxu0 %v459
    %662 = vmatpush.msra.mxu0 %v455
    %663 = vmatpush.msra.mxu0 %v451
    %664 = vmatpush.msra.mxu0 %v447
    %665 = vmatpush.msra.mxu0 %v443
    %666 = vmatpush.msra.mxu0 %v439
    %667 = vmatpush.msra.mxu0 %v435
    %668 = vmatpush.msra.mxu0 %v431
    %669 = vmatpush.msra.mxu0 %v427
    %670 = vmatpush.msra.mxu0 %v423
    %671 = vmatpush.msra.mxu0 %v419
    %672 = vmatpush.msra.mxu0 %v415
    %673 = vmatpush.msra.mxu0 %v411
    %674 = vmatpush.msra.mxu0 %v407
    %675 = vmatpush.msra.mxu0 %v403
    %676 = vmatmul.f32.gmra.mxu0 %v272
    %v677 = vpop.f32.mrf.mxu0
    %v678 = vadd.f32 %v658, %v677
    %679 = vdwg.mxu0
    %680 = vmatpush.msra.mxu0 %v527
    %681 = vmatpush.msra.mxu0 %v523
    %682 = vmatpush.msra.mxu0 %v519
    %683 = vmatpush.msra.mxu0 %v515
    %684 = vmatpush.msra.mxu0 %v511
    %685 = vmatpush.msra.mxu0 %v507
    %686 = vmatpush.msra.mxu0 %v503
    %687 = vmatpush.msra.mxu0 %v499
    %688 = vmatpush.msra.mxu0 %v495
    %689 = vmatpush.msra.mxu0 %v491
    %690 = vmatpush.msra.mxu0 %v487
    %691 = vmatpush.msra.mxu0 %v483
    %692 = vmatpush.msra.mxu0 %v479
    %693 = vmatpush.msra.mxu0 %v475
    %694 = vmatpush.msra.mxu0 %v471
    %695 = vmatpush.msra.mxu0 %v467
    %696 = vmatmul.f32.gmra.mxu0 %v273
    %v697 = vpop.f32.mrf.mxu0
    %v698 = vadd.f32 %v678, %v697
    %699 = vdwg.mxu0
    %700 = vmatpush.msra.mxu0 %v336
    %701 = vmatpush.msra.mxu0 %v332
    %702 = vmatpush.msra.mxu0 %v328
    %703 = vmatpush.msra.mxu0 %v324
    %704 = vmatpush.msra.mxu0 %v320
    %705 = vmatpush.msra.mxu0 %v316
    %706 = vmatpush.msra.mxu0 %v312
    %707 = vmatpush.msra.mxu0 %v308
    %708 = vmatpush.msra.mxu0 %v304
    %709 = vmatpush.msra.mxu0 %v300
    %710 = vmatpush.msra.mxu0 %v296
    %711 = vmatpush.msra.mxu0 %v292
    %712 = vmatpush.msra.mxu0 %v288
    %713 = vmatpush.msra.mxu0 %v284
    %714 = vmatpush.msra.mxu0 %v280
    %715 = vmatpush.msra.mxu0 %v276
    %716 = vmatmul.f32.gmra.mxu0 %v270
    %v717 = vpop.f32.mrf.mxu0
    %v718 = vadd.f32 %v534, %v717
    %719 = vdwg.mxu0
    %720 = vmatpush.msra.mxu0 %v400
    %721 = vmatpush.msra.mxu0 %v396
    %722 = vmatpush.msra.mxu0 %v392
    %723 = vmatpush.msra.mxu0 %v388
    %724 = vmatpush.msra.mxu0 %v384
    %725 = vmatpush.msra.mxu0 %v380
    %726 = vmatpush.msra.mxu0 %v376
    %727 = vmatpush.msra.mxu0 %v372
    %728 = vmatpush.msra.mxu0 %v368
    %729 = vmatpush.msra.mxu0 %v364
    %730 = vmatpush.msra.mxu0 %v360
    %731 = vmatpush.msra.mxu0 %v356
    %732 = vmatpush.msra.mxu0 %v352
    %733 = vmatpush.msra.mxu0 %v348
    %734 = vmatpush.msra.mxu0 %v344
    %735 = vmatpush.msra.mxu0 %v340
    %736 = vmatmul.f32.gmra.mxu0 %v271
    %v737 = vpop.f32.mrf.mxu0
    %v738 = vadd.f32 %v718, %v737
    %739 = vdwg.mxu0
    %740 = vmatpush.msra.mxu0 %v464
    %741 = vmatpush.msra.mxu0 %v460
    %742 = vmatpush.msra.mxu0 %v456
    %743 = vmatpush.msra.mxu0 %v452
    %744 = vmatpush.msra.mxu0 %v448
    %745 = vmatpush.msra.mxu0 %v444
    %746 = vmatpush.msra.mxu0 %v440
    %747 = vmatpush.msra.mxu0 %v436
    %748 = vmatpush.msra.mxu0 %v432
    %749 = vmatpush.msra.mxu0 %v428
    %750 = vmatpush.msra.mxu0 %v424
    %751 = vmatpush.msra.mxu0 %v420
    %752 = vmatpush.msra.mxu0 %v416
    %753 = vmatpush.msra.mxu0 %v412
    %754 = vmatpush.msra.mxu0 %v408
    %755 = vmatpush.msra.mxu0 %v404
    %756 = vmatmul.f32.gmra.mxu0 %v272
    %v757 = vpop.f32.mrf.mxu0
    %v758 = vadd.f32 %v738, %v757
    %759 = vdwg.mxu0
    %760 = vmatpush.msra.mxu0 %v528
    %761 = vmatpush.msra.mxu0 %v524
    %762 = vmatpush.msra.mxu0 %v520
    %763 = vmatpush.msra.mxu0 %v516
    %764 = vmatpush.msra.mxu0 %v512
    %765 = vmatpush.msra.mxu0 %v508
    %766 = vmatpush.msra.mxu0 %v504
    %767 = vmatpush.msra.mxu0 %v500
    %768 = vmatpush.msra.mxu0 %v496
    %769 = vmatpush.msra.mxu0 %v492
    %770 = vmatpush.msra.mxu0 %v488
    %771 = vmatpush.msra.mxu0 %v484
    %772 = vmatpush.msra.mxu0 %v480
    %773 = vmatpush.msra.mxu0 %v476
    %774 = vmatpush.msra.mxu0 %v472
    %775 = vmatpush.msra.mxu0 %v468
    %776 = vmatmul.f32.gmra.mxu0 %v273
    %v777 = vpop.f32.mrf.mxu0
    %v778 = vadd.f32 %v758, %v777
    %779 = vdwg.mxu0
    %780 = vmatpush.msra.mxu0 %v337
    %781 = vmatpush.msra.mxu0 %v333
    %782 = vmatpush.msra.mxu0 %v329
    %783 = vmatpush.msra.mxu0 %v325
    %784 = vmatpush.msra.mxu0 %v321
    %785 = vmatpush.msra.mxu0 %v317
    %786 = vmatpush.msra.mxu0 %v313
    %787 = vmatpush.msra.mxu0 %v309
    %788 = vmatpush.msra.mxu0 %v305
    %789 = vmatpush.msra.mxu0 %v301
    %790 = vmatpush.msra.mxu0 %v297
    %791 = vmatpush.msra.mxu0 %v293
    %792 = vmatpush.msra.mxu0 %v289
    %793 = vmatpush.msra.mxu0 %v285
    %794 = vmatpush.msra.mxu0 %v281
    %795 = vmatpush.msra.mxu0 %v277
    %796 = vmatmul.f32.gmra.mxu0 %v270
    %v797 = vpop.f32.mrf.mxu0
    %v798 = vadd.f32 %v535, %v797
    %799 = vdwg.mxu0
    %800 = vmatpush.msra.mxu0 %v401
    %801 = vmatpush.msra.mxu0 %v397
    %802 = vmatpush.msra.mxu0 %v393
    %803 = vmatpush.msra.mxu0 %v389
    %804 = vmatpush.msra.mxu0 %v385
    %805 = vmatpush.msra.mxu0 %v381
    %806 = vmatpush.msra.mxu0 %v377
    %807 = vmatpush.msra.mxu0 %v373
    %808 = vmatpush.msra.mxu0 %v369
    %809 = vmatpush.msra.mxu0 %v365
    %810 = vmatpush.msra.mxu0 %v361
    %811 = vmatpush.msra.mxu0 %v357
    %812 = vmatpush.msra.mxu0 %v353
    %813 = vmatpush.msra.mxu0 %v349
    %814 = vmatpush.msra.mxu0 %v345
    %815 = vmatpush.msra.mxu0 %v341
    %816 = vmatmul.f32.gmra.mxu0 %v271
    %v817 = vpop.f32.mrf.mxu0
    %v818 = vadd.f32 %v798, %v817
    %819 = vdwg.mxu0
    %820 = vmatpush.msra.mxu0 %v465
    %821 = vmatpush.msra.mxu0 %v461
    %822 = vmatpush.msra.mxu0 %v457
    %823 = vmatpush.msra.mxu0 %v453
    %824 = vmatpush.msra.mxu0 %v449
    %825 = vmatpush.msra.mxu0 %v445
    %826 = vmatpush.msra.mxu0 %v441
    %827 = vmatpush.msra.mxu0 %v437
    %828 = vmatpush.msra.mxu0 %v433
    %829 = vmatpush.msra.mxu0 %v429
    %830 = vmatpush.msra.mxu0 %v425
    %831 = vmatpush.msra.mxu0 %v421
    %832 = vmatpush.msra.mxu0 %v417
    %833 = vmatpush.msra.mxu0 %v413
    %834 = vmatpush.msra.mxu0 %v409
    %835 = vmatpush.msra.mxu0 %v405
    %836 = vmatmul.f32.gmra.mxu0 %v272
    %v837 = vpop.f32.mrf.mxu0
    %v838 = vadd.f32 %v818, %v837
    %839 = vdwg.mxu0
    %840 = vmatpush.msra.mxu0 %v529
    %841 = vmatpush.msra.mxu0 %v525
    %842 = vmatpush.msra.mxu0 %v521
    %843 = vmatpush.msra.mxu0 %v517
    %844 = vmatpush.msra.mxu0 %v513
    %845 = vmatpush.msra.mxu0 %v509
    %846 = vmatpush.msra.mxu0 %v505
    %847 = vmatpush.msra.mxu0 %v501
    %848 = vmatpush.msra.mxu0 %v497
    %849 = vmatpush.msra.mxu0 %v493
    %850 = vmatpush.msra.mxu0 %v489
    %851 = vmatpush.msra.mxu0 %v485
    %852 = vmatpush.msra.mxu0 %v481
    %853 = vmatpush.msra.mxu0 %v477
    %854 = vmatpush.msra.mxu0 %v473
    %855 = vmatpush.msra.mxu0 %v469
    %856 = vmatmul.f32.gmra.mxu0 %v273
    %v857 = vpop.f32.mrf.mxu0
    %v858 = vadd.f32 %v838, %v857
    %859 = vdwg.mxu0
    %v860 = vmax.f32 %v618, 0.0
    %v861 = vmax.f32 %v698, 0.0
    %v862 = vmax.f32 %v778, 0.0
    %v863 = vmax.f32 %v858, 0.0
    %v864 = vld [vmem:[#allocation11] sm:$0xff]
    %v865 = vld [vmem:[#allocation11 + $0x8] sm:$0xff]
    %v866 = vld [vmem:[#allocation11 + $0x10] sm:$0xff]
    %v867 = vld [vmem:[#allocation11 + $0x18] sm:$0xff]
    %v868 = vld [vmem:[#allocation11 + $0x20] sm:$0xff]
    %v869 = vld [vmem:[#allocation11 + $0x28] sm:$0xff]
    %v870 = vld [vmem:[#allocation11 + $0x30] sm:$0xff]
    %v871 = vld [vmem:[#allocation11 + $0x38] sm:$0xff]
    %v872 = vld [vmem:[#allocation11 + $0x40] sm:$0xff]
    %v873 = vld [vmem:[#allocation11 + $0x48] sm:$0xff]
    %v874 = vld [vmem:[#allocation11 + $0x50] sm:$0xff]
    %v875 = vld [vmem:[#allocation11 + $0x58] sm:$0xff]
    %v876 = vld [vmem:[#allocation11 + $0x60] sm:$0xff]
    %v877 = vld [vmem:[#allocation11 + $0x68] sm:$0xff]
    %v878 = vld [vmem:[#allocation11 + $0x70] sm:$0xff]
    %v879 = vld [vmem:[#allocation11 + $0x78] sm:$0xff]
    %v880 = vld [vmem:[#allocation11 + $0x80] sm:$0xff]
    %v881 = vld [vmem:[#allocation11 + $0x88] sm:$0xff]
    %v882 = vld [vmem:[#allocation11 + $0x90] sm:$0xff]
    %v883 = vld [vmem:[#allocation11 + $0x98] sm:$0xff]
    %v884 = vld [vmem:[#allocation11 + $0xa0] sm:$0xff]
    %v885 = vld [vmem:[#allocation11 + $0xa8] sm:$0xff]
    %v886 = vld [vmem:[#allocation11 + $0xb0] sm:$0xff]
    %v887 = vld [vmem:[#allocation11 + $0xb8] sm:$0xff]
    %v888 = vld [vmem:[#allocation11 + $0xc0] sm:$0xff]
    %v889 = vld [vmem:[#allocation11 + $0xc8] sm:$0xff]
    %v890 = vld [vmem:[#allocation11 + $0xd0] sm:$0xff]
    %v891 = vld [vmem:[#allocation11 + $0xd8] sm:$0xff]
    %v892 = vld [vmem:[#allocation11 + $0xe0] sm:$0xff]
    %v893 = vld [vmem:[#allocation11 + $0xe8] sm:$0xff]
    %v894 = vld [vmem:[#allocation11 + $0xf0] sm:$0xff]
    %v895 = vld [vmem:[#allocation11 + $0xf8] sm:$0xff]
    %v896 = vld [vmem:[#allocation11 + $0x100] sm:$0xff]
    %v897 = vld [vmem:[#allocation11 + $0x108] sm:$0xff]
    %v898 = vld [vmem:[#allocation11 + $0x110] sm:$0xff]
    %v899 = vld [vmem:[#allocation11 + $0x118] sm:$0xff]
    %v900 = vld [vmem:[#allocation11 + $0x120] sm:$0xff]
    %v901 = vld [vmem:[#allocation11 + $0x128] sm:$0xff]
    %v902 = vld [vmem:[#allocation11 + $0x130] sm:$0xff]
    %v903 = vld [vmem:[#allocation11 + $0x138] sm:$0xff]
    %v904 = vld [vmem:[#allocation11 + $0x140] sm:$0xff]
    %v905 = vld [vmem:[#allocation11 + $0x148] sm:$0xff]
    %v906 = vld [vmem:[#allocation11 + $0x150] sm:$0xff]
    %v907 = vld [vmem:[#allocation11 + $0x158] sm:$0xff]
    %v908 = vld [vmem:[#allocation11 + $0x160] sm:$0xff]
    %v909 = vld [vmem:[#allocation11 + $0x168] sm:$0xff]
    %v910 = vld [vmem:[#allocation11 + $0x170] sm:$0xff]
    %v911 = vld [vmem:[#allocation11 + $0x178] sm:$0xff]
    %v912 = vld [vmem:[#allocation11 + $0x180] sm:$0xff]
    %v913 = vld [vmem:[#allocation11 + $0x188] sm:$0xff]
    %v914 = vld [vmem:[#allocation11 + $0x190] sm:$0xff]
    %v915 = vld [vmem:[#allocation11 + $0x198] sm:$0xff]
    %v916 = vld [vmem:[#allocation11 + $0x1a0] sm:$0xff]
    %v917 = vld [vmem:[#allocation11 + $0x1a8] sm:$0xff]
    %v918 = vld [vmem:[#allocation11 + $0x1b0] sm:$0xff]
    %v919 = vld [vmem:[#allocation11 + $0x1b8] sm:$0xff]
    %v920 = vld [vmem:[#allocation11 + $0x1c0] sm:$0xff]
    %v921 = vld [vmem:[#allocation11 + $0x1c8] sm:$0xff]
    %v922 = vld [vmem:[#allocation11 + $0x1d0] sm:$0xff]
    %v923 = vld [vmem:[#allocation11 + $0x1d8] sm:$0xff]
    %v924 = vld [vmem:[#allocation11 + $0x1e0] sm:$0xff]
    %v925 = vld [vmem:[#allocation11 + $0x1e8] sm:$0xff]
    %v926 = vld [vmem:[#allocation11 + $0x1f0] sm:$0xff]
    %v927 = vld [vmem:[#allocation11 + $0x1f8] sm:$0xff]
    %v928 = vld [vmem:[%s6] sm:$0x1]
    %v930 = vperm.slane %v928, 0
    %932 = vmatpush.msra.mxu0 %v879
    %933 = vmatpush.msra.mxu0 %v878
    %934 = vmatpush.msra.mxu0 %v877
    %935 = vmatpush.msra.mxu0 %v876
    %936 = vmatpush.msra.mxu0 %v875
    %937 = vmatpush.msra.mxu0 %v874
    %938 = vmatpush.msra.mxu0 %v873
    %939 = vmatpush.msra.mxu0 %v872
    %940 = vmatpush.msra.mxu0 %v871
    %941 = vmatpush.msra.mxu0 %v870
    %942 = vmatpush.msra.mxu0 %v869
    %943 = vmatpush.msra.mxu0 %v868
    %944 = vmatpush.msra.mxu0 %v867
    %945 = vmatpush.msra.mxu0 %v866
    %946 = vmatpush.msra.mxu0 %v865
    %947 = vmatpush.msra.mxu0 %v864
    %948 = vmatmul.f32.gmra.mxu0 %v860
    %v949 = vpop.f32.mrf.mxu0
    %v950 = vadd.f32 %v930, %v949
    %951 = vdwg.mxu0
    %952 = vmatpush.msra.mxu0 %v895
    %953 = vmatpush.msra.mxu0 %v894
    %954 = vmatpush.msra.mxu0 %v893
    %955 = vmatpush.msra.mxu0 %v892
    %956 = vmatpush.msra.mxu0 %v891
    %957 = vmatpush.msra.mxu0 %v890
    %958 = vmatpush.msra.mxu0 %v889
    %959 = vmatpush.msra.mxu0 %v888
    %960 = vmatpush.msra.mxu0 %v887
    %961 = vmatpush.msra.mxu0 %v886
    %962 = vmatpush.msra.mxu0 %v885
    %963 = vmatpush.msra.mxu0 %v884
    %964 = vmatpush.msra.mxu0 %v883
    %965 = vmatpush.msra.mxu0 %v882
    %966 = vmatpush.msra.mxu0 %v881
    %967 = vmatpush.msra.mxu0 %v880
    %968 = vmatmul.f32.gmra.mxu0 %v861
    %v969 = vpop.f32.mrf.mxu0
    %v970 = vadd.f32 %v950, %v969
    %971 = vdwg.mxu0
    %972 = vmatpush.msra.mxu0 %v911
    %973 = vmatpush.msra.mxu0 %v910
    %974 = vmatpush.msra.mxu0 %v909
    %975 = vmatpush.msra.mxu0 %v908
    %976 = vmatpush.msra.mxu0 %v907
    %977 = vmatpush.msra.mxu0 %v906
    %978 = vmatpush.msra.mxu0 %v905
    %979 = vmatpush.msra.mxu0 %v904
    %980 = vmatpush.msra.mxu0 %v903
    %981 = vmatpush.msra.mxu0 %v902
    %982 = vmatpush.msra.mxu0 %v901
    %983 = vmatpush.msra.mxu0 %v900
    %984 = vmatpush.msra.mxu0 %v899
    %985 = vmatpush.msra.mxu0 %v898
    %986 = vmatpush.msra.mxu0 %v897
    %987 = vmatpush.msra.mxu0 %v896
    %988 = vmatmul.f32.gmra.mxu0 %v862
    %v989 = vpop.f32.mrf.mxu0
    %v990 = vadd.f32 %v970, %v989
    %991 = vdwg.mxu0
    %992 = vmatpush.msra.mxu0 %v927
    %993 = vmatpush.msra.mxu0 %v926
    %994 = vmatpush.msra.mxu0 %v925
    %995 = vmatpush.msra.mxu0 %v924
    %996 = vmatpush.msra.mxu0 %v923
    %997 = vmatpush.msra.mxu0 %v922
    %998 = vmatpush.msra.mxu0 %v921
    %999 = vmatpush.msra.mxu0 %v920
    %1000 = vmatpush.msra.mxu0 %v919
    %1001 = vmatpush.msra.mxu0 %v918
    %1002 = vmatpush.msra.mxu0 %v917
    %1003 = vmatpush.msra.mxu0 %v916
    %1004 = vmatpush.msra.mxu0 %v915
    %1005 = vmatpush.msra.mxu0 %v914
    %1006 = vmatpush.msra.mxu0 %v913
    %1007 = vmatpush.msra.mxu0 %v912
    %1008 = vmatmul.f32.gmra.mxu0 %v863
    %v1009 = vpop.f32.mrf.mxu0
    %v1010 = vadd.f32 %v990, %v1009
    %1011 = vdwg.mxu0
    %1012 = vst [vmem:[#allocation13] sm:$0xff] %v1010
    // Predicated region
    $region54: #{tpu_custom_call.1} parent=1 // pred_check
      _
    $region55: #{tpu_custom_call.1} parent=1 // pred_check_branch
      %1014 = sbr.rel (0) target = $region57
    $region56: #{tpu_custom_call.1} parent=1 // pred_region
      %1016 = vsyncadd [#allocation4], 0
      %s1018 = sshll.u32 [#allocation13], 4
      %s1019 = int_to_ptr.vmem [resolvable:$true] %s1018
      %s1020 = sshll.u32 %s7, 4
      %s1021 = int_to_ptr.hbm [resolvable:$true] %s1020
      %1023 = dma.vmem_to_hbm [thread:$0]  %s1019, 128, %s1021, [#allocation4]
    $region57: #{tpu_custom_call.1} parent=1 // pred_fallthru
      _
    // Predicated region
    $region58: #{tpu_custom_call.1} parent=1 // pred_check
      _
    $region59: #{tpu_custom_call.1} parent=1 // pred_check_branch
      %1025 = sbr.rel (0) target = $region61
    $region60: #{tpu_custom_call.1} parent=1 // pred_region
      %1027 = dma.done [#allocation4], 128
    $region61: #{tpu_custom_call.1} parent=1 // pred_fallthru
      _
    %1028 = vsyncpa [#allocation3], 1
    %1029 = vsyncpa [#allocation6], 1
    %1030 = vsyncpa [#allocation9], 1
    %1031 = vsyncpa [#allocation12], 1
    %1032 = vsyncpa [#allocation4], 1

</llo_original>
